<compile_context>
chip_gen: v7x
topology: tpu7x:2x2x1
jax: 0.10.0
libtpu: 0.0.40
codegen_flags: <defaults>
</compile_context>

<pallas_src>
import jax
import jax.numpy as jnp
from jax.experimental import pallas as pl
from jax.experimental.pallas import tpu as pltpu


def ui_encoder_kernel(ids_ref, emb_ref, w1t_ref, b1_ref, a1_ref, watt_ref,
                      q_ref):
    # ids_ref : (TB, 1)  int32   id per batch row in this tile
    # emb_ref : (V, De)  f32     embedding table (resident)
    # w1t_ref : (De, Da) f32     Linear weight, pre-transposed
    # b1_ref  : (1, Da)  f32     Linear bias
    # a1_ref  : (Da, F)  f32     attention projection A1
    # watt_ref: (TB, R, F) f32   word-level attention reps, (B, R, F) layout
    # q_ref   : (TB, F)  f32     output tile (wrapper appends trailing 1)
    tb = ids_ref.shape[0]
    v = emb_ref.shape[0]

    # --- embedding gather as a one-hot matmul (no id_vec HBM roundtrip) ---
    ids = ids_ref[...]                                       # (TB, 1) int32
    rows = jax.lax.broadcasted_iota(jnp.int32, (tb, v), 1)   # (TB, V)
    onehot = (ids == rows).astype(jnp.float32)               # (TB, V)
    idv = jnp.dot(onehot, emb_ref[...],
                  preferred_element_type=jnp.float32)        # (TB, De)

    # --- qr = relu(id_vec @ W1^T + b1) ---
    qr = jnp.maximum(
        jnp.dot(idv, w1t_ref[...], preferred_element_type=jnp.float32)
        + b1_ref[...],
        0.0,
    )                                                        # (TB, Da)

    # --- e = qr @ A1 ---
    e = jnp.dot(qr, a1_ref[...],
                preferred_element_type=jnp.float32)          # (TB, F)

    watt = watt_ref[...]                                     # (TB, R, F)

    # --- s[b, r] = sum_f e[b, f] * watt[b, r, f]  (VPU mult + lane reduce) ---
    s = jnp.sum(e[:, None, :] * watt, axis=-1)               # (TB, R)

    # --- softmax over the review axis (torch dim=2) ---
    s = s - jnp.max(s, axis=-1, keepdims=True)
    p = jnp.exp(s)
    inv_denom = pl.reciprocal(jnp.sum(p, axis=-1, keepdims=True), approx=True)
    beta = p * inv_denom                                     # (TB, R)

    # --- q[b, f] = sum_r watt[b, r, f] * beta[b, r]  (sublane reduce) ---
    q = jnp.sum(watt * beta[:, :, None], axis=1)             # (TB, F)

    q_ref[...] = q.astype(q_ref.dtype)


def _round_up(x, m):
    return ((x + m - 1) // m) * m


def ui_encoder_forward(word_att, ids, params, *, tb=128):
    """word_att: (B, F, R) f32; ids: (B,) int. Returns (B, F, 1) f32."""
    emb, w1, b1, a1 = params["emb"], params["w1"], params["b1"], params["a1"]
    B, F, R = word_att.shape
    V, De = emb.shape
    Da = w1.shape[0]

    # Batch tile: multiple of the 8-row sublane group, capped at `tb`.
    TB = min(tb, _round_up(B, 8))
    B_pad = _round_up(B, TB)

    # Lane-friendly layout: (B, R, F) puts F=32 on the lane axis.
    watt_t = jnp.transpose(word_att, (0, 2, 1))              # (B, R, F)
    ids_i32 = ids.astype(jnp.int32)
    if B_pad != B:
        watt_t = jnp.pad(watt_t, ((0, B_pad - B), (0, 0), (0, 0)))
        ids_i32 = jnp.pad(ids_i32, (0, B_pad - B))           # pad with id 0
    ids_2d = ids_i32.reshape(B_pad, 1)

    w1t = w1.T                                               # (De, Da)
    b1_2d = b1.reshape(1, Da)

    grid = (B_pad // TB,)

    q = pl.pallas_call(
        ui_encoder_kernel,
        out_shape=jax.ShapeDtypeStruct((B_pad, F), jnp.float32),
        grid=grid,
        in_specs=[
            pl.BlockSpec((TB, 1), lambda i: (i, 0)),        # ids (per tile)
            pl.BlockSpec((V, De), lambda i: (0, 0)),        # emb (resident)
            pl.BlockSpec((De, Da), lambda i: (0, 0)),       # W1^T (resident)
            pl.BlockSpec((1, Da), lambda i: (0, 0)),        # b1 (resident)
            pl.BlockSpec((Da, F), lambda i: (0, 0)),        # A1 (resident)
            pl.BlockSpec((TB, R, F), lambda i: (i, 0, 0)),  # word_Att tile
        ],
        out_specs=pl.BlockSpec((TB, F), lambda i: (i, 0)),
        compiler_params=pltpu.CompilerParams(
            dimension_semantics=("parallel",),
        ),
    )(ids_2d, emb, w1t, b1_2d, a1, watt_t)

    # TODO(synk): output last dim F=32 < 128 lanes -> masked stores; a
    # lane-dense (TB*F/128, 128) output slab would need an in-kernel relayout
    # that costs more XLU than the store saves at this F, so it is skipped.
    return q[:B, :, None]                                    # (B, F, 1)


def ui_encoder_reference(word_att, ids, params):
    """Plain-JAX reference for correctness check (matches torch forward)."""
    id_vec = jnp.take(params["emb"], ids, axis=0)
    qr = jax.nn.relu(id_vec @ params["w1"].T + params["b1"])
    e = (qr @ params["a1"])[:, None, :]                      # (B, 1, F)
    e = jnp.einsum("bif,bfr->bir", e, word_att)              # (B, 1, R)
    beta = jax.nn.softmax(e, axis=2)                         # (B, 1, R)
    q = jnp.einsum("bfr,bir->bfi", word_att, beta)           # (B, F, 1)
    return q


if __name__ == "__main__":
    # Module hyperparameters (small, consistent with the forward pass)
    conv_kernel_num = 32    # F
    id_matrix_len = 50      # V
    id_embedding_dim = 32   # De
    atten_vec_dim = 16      # Da
    num_reviews = 8         # R
    batch = 2               # B

    key = jax.random.PRNGKey(0)
    k_emb, k_w1, k_b1, k_a1, k_watt, k_ids = jax.random.split(key, 6)

    params = {
        # nn.Embedding(id_matrix_len, id_embedding_dim): N(0,1) init
        "emb": jax.random.normal(
            k_emb, (id_matrix_len, id_embedding_dim), jnp.float32),
        # nn.Linear(id_embedding_dim, atten_vec_dim): weight (Da, De), bias (Da,)
        "w1": jax.random.normal(
            k_w1, (atten_vec_dim, id_embedding_dim), jnp.float32) * 0.1,
        "b1": jax.random.normal(k_b1, (atten_vec_dim,), jnp.float32) * 0.1,
        # nn.Parameter(torch.randn(atten_vec_dim, conv_kernel_num))
        "a1": jax.random.normal(
            k_a1, (atten_vec_dim, conv_kernel_num), jnp.float32),
    }

    word_att = jax.random.normal(
        k_watt, (batch, conv_kernel_num, num_reviews), jnp.float32)
    ids = jax.random.randint(k_ids, (batch,), 0, id_matrix_len, jnp.int32)

    q = ui_encoder_forward(word_att, ids, params)
    q = jax.block_until_ready(q)

    q_ref = ui_encoder_reference(word_att, ids, params)
    assert q.shape == (batch, conv_kernel_num, 1)
    # Tolerance relaxed vs 1e-5 because the softmax denominator uses the EUP
    # approximate reciprocal (pl.reciprocal(..., approx=True)).
    assert jnp.allclose(q, q_ref, atol=2e-3, rtol=2e-3)

    print("KERNEL_OK")
</pallas_src>

<mosaic_0001>
module attributes {stable_mosaic.version = 11 : i64} {
  func.func @ui_encoder_kernel(%arg0: i32, %arg1: memref<8x1xi32, #tpu.memory_space<vmem>>, %arg2: memref<50x32xf32, #tpu.memory_space<vmem>>, %arg3: memref<32x16xf32, #tpu.memory_space<vmem>>, %arg4: memref<1x16xf32, #tpu.memory_space<vmem>>, %arg5: memref<16x32xf32, #tpu.memory_space<vmem>>, %arg6: memref<8x8x32xf32, #tpu.memory_space<vmem>>, %arg7: memref<8x32xf32, #tpu.memory_space<vmem>>) attributes {dimension_semantics = [#tpu.dimension_semantics<parallel>], iteration_bounds = array<i64: 1>, scalar_prefetch = 0 : i64, scratch_operands = 0 : i64, tpu.core_type = #tpu.core_type<tc>, window_params = [{transform_indices = @transform_0, window_bounds = array<i64: 8, 1>}, {pipeline_mode = #tpu.pipeline_mode<synchronous>, transform_indices = @transform_1, window_bounds = array<i64: 50, 32>}, {pipeline_mode = #tpu.pipeline_mode<synchronous>, transform_indices = @transform_2, window_bounds = array<i64: 32, 16>}, {pipeline_mode = #tpu.pipeline_mode<synchronous>, transform_indices = @transform_3, window_bounds = array<i64: 1, 16>}, {pipeline_mode = #tpu.pipeline_mode<synchronous>, transform_indices = @transform_4, window_bounds = array<i64: 16, 32>}, {transform_indices = @transform_5, window_bounds = array<i64: 8, 8, 32>}, {transform_indices = @transform_6, window_bounds = array<i64: 8, 32>}]} {
    %c0 = arith.constant 0 : index
    %c0_0 = arith.constant 0 : index
    %0 = vector.load %arg1[%c0, %c0_0] : memref<8x1xi32, #tpu.memory_space<vmem>>, vector<8x1xi32>
    %1 = tpu.iota {dimensions = array<i32: 1>} : vector<8x50xi32>
    %2 = vector.broadcast %0 : vector<8x1xi32> to vector<8x50xi32>
    %3 = arith.cmpi eq, %2, %1 : vector<8x50xi32>
    %4 = arith.extui %3 : vector<8x50xi1> to vector<8x50xi32>
    %5 = arith.sitofp %4 : vector<8x50xi32> to vector<8x50xf32>
    %c0_1 = arith.constant 0 : index
    %c0_2 = arith.constant 0 : index
    %6 = vector.load %arg2[%c0_1, %c0_2] : memref<50x32xf32, #tpu.memory_space<vmem>>, vector<50x32xf32>
    %cst = arith.constant dense<0.000000e+00> : vector<8x32xf32>
    %7 = tpu.matmul %5, %6, %cst {dimension_numbers = #tpu.dot_dimension_numbers<[1], [0], [0], [1], [0, 0, 1, 1], [], []>} : vector<8x50xf32>, vector<50x32xf32>, vector<8x32xf32> -> vector<8x32xf32>
    %c0_3 = arith.constant 0 : index
    %c0_4 = arith.constant 0 : index
    %8 = vector.load %arg3[%c0_3, %c0_4] : memref<32x16xf32, #tpu.memory_space<vmem>>, vector<32x16xf32>
    %cst_5 = arith.constant dense<0.000000e+00> : vector<8x16xf32>
    %9 = tpu.matmul %7, %8, %cst_5 {dimension_numbers = #tpu.dot_dimension_numbers<[1], [0], [0], [1], [0, 0, 1, 1], [], []>} : vector<8x32xf32>, vector<32x16xf32>, vector<8x16xf32> -> vector<8x16xf32>
    %c0_6 = arith.constant 0 : index
    %c0_7 = arith.constant 0 : index
    %10 = vector.load %arg4[%c0_6, %c0_7] : memref<1x16xf32, #tpu.memory_space<vmem>>, vector<1x16xf32>
    %11 = vector.broadcast %10 : vector<1x16xf32> to vector<8x16xf32>
    %12 = arith.addf %9, %11 : vector<8x16xf32>
    %cst_8 = arith.constant 0.000000e+00 : f32
    %13 = vector.broadcast %cst_8 : f32 to vector<8x16xf32>
    %14 = arith.maximumf %12, %13 : vector<8x16xf32>
    %c0_9 = arith.constant 0 : index
    %c0_10 = arith.constant 0 : index
    %15 = vector.load %arg5[%c0_9, %c0_10] : memref<16x32xf32, #tpu.memory_space<vmem>>, vector<16x32xf32>
    %cst_11 = arith.constant dense<0.000000e+00> : vector<8x32xf32>
    %16 = tpu.matmul %14, %15, %cst_11 {dimension_numbers = #tpu.dot_dimension_numbers<[1], [0], [0], [1], [0, 0, 1, 1], [], []>} : vector<8x16xf32>, vector<16x32xf32>, vector<8x32xf32> -> vector<8x32xf32>
    %c0_12 = arith.constant 0 : index
    %c0_13 = arith.constant 0 : index
    %c0_14 = arith.constant 0 : index
    %17 = vector.load %arg6[%c0_12, %c0_13, %c0_14] : memref<8x8x32xf32, #tpu.memory_space<vmem>>, vector<8x8x32xf32>
    %18 = vector.shape_cast %16 : vector<8x32xf32> to vector<8x1x32xf32>
    %19 = vector.broadcast %18 : vector<8x1x32xf32> to vector<8x8x32xf32>
    %20 = arith.mulf %19, %17 : vector<8x8x32xf32>
    %cst_15 = arith.constant dense<0.000000e+00> : vector<8x8xf32>
    %21 = vector.multi_reduction <add>, %20, %cst_15 [2] : vector<8x8x32xf32> to vector<8x8xf32>
    %cst_16 = arith.constant dense<0xFF800000> : vector<8xf32>
    %22 = vector.multi_reduction <maximumf>, %21, %cst_16 [1] : vector<8x8xf32> to vector<8xf32>
    %23 = vector.shape_cast %22 : vector<8xf32> to vector<8x1xf32>
    %24 = vector.broadcast %23 : vector<8x1xf32> to vector<8x8xf32>
    %25 = arith.subf %21, %24 : vector<8x8xf32>
    %26 = math.exp %25 : vector<8x8xf32>
    %cst_17 = arith.constant dense<0.000000e+00> : vector<8xf32>
    %27 = vector.multi_reduction <add>, %26, %cst_17 [1] : vector<8x8xf32> to vector<8xf32>
    %28 = vector.shape_cast %27 : vector<8xf32> to vector<8x1xf32>
    %29 = tpu.reciprocal %28 {approx = true} : vector<8x1xf32> -> vector<8x1xf32>
    %30 = vector.broadcast %29 : vector<8x1xf32> to vector<8x8xf32>
    %31 = arith.mulf %26, %30 : vector<8x8xf32>
    %32 = vector.shape_cast %31 : vector<8x8xf32> to vector<8x8x1xf32>
    %33 = vector.broadcast %32 : vector<8x8x1xf32> to vector<8x8x32xf32>
    %34 = arith.mulf %17, %33 : vector<8x8x32xf32>
    %cst_18 = arith.constant dense<0.000000e+00> : vector<8x32xf32>
    %35 = vector.multi_reduction <add>, %34, %cst_18 [1] : vector<8x8x32xf32> to vector<8x32xf32>
    %c0_19 = arith.constant 0 : index
    %c0_20 = arith.constant 0 : index
    %36 = vector.load %arg7[%c0_19, %c0_20] : memref<8x32xf32, #tpu.memory_space<vmem>>, vector<8x32xf32>
    tpu.vector_store %arg7[%c0_19, %c0_20], %35 {strides = array<i32>} : memref<8x32xf32, #tpu.memory_space<vmem>>, vector<8x32xf32>,
    return
  }
  func.func @transform_0(%arg0: i32) -> (i32, i32) {
    %c0_i32 = arith.constant 0 : i32
    %c0_i32_0 = arith.constant 0 : i32
    return %arg0, %c0_i32 : i32, i32
  }
  func.func @transform_1(%arg0: i32) -> (i32, i32) {
    %c0_i32 = arith.constant 0 : i32
    %c0_i32_0 = arith.constant 0 : i32
    %c0_i32_1 = arith.constant 0 : i32
    return %c0_i32, %c0_i32_0 : i32, i32
  }
  func.func @transform_2(%arg0: i32) -> (i32, i32) {
    %c0_i32 = arith.constant 0 : i32
    %c0_i32_0 = arith.constant 0 : i32
    %c0_i32_1 = arith.constant 0 : i32
    return %c0_i32, %c0_i32_0 : i32, i32
  }
  func.func @transform_3(%arg0: i32) -> (i32, i32) {
    %c0_i32 = arith.constant 0 : i32
    %c0_i32_0 = arith.constant 0 : i32
    %c0_i32_1 = arith.constant 0 : i32
    return %c0_i32, %c0_i32_0 : i32, i32
  }
  func.func @transform_4(%arg0: i32) -> (i32, i32) {
    %c0_i32 = arith.constant 0 : i32
    %c0_i32_0 = arith.constant 0 : i32
    %c0_i32_1 = arith.constant 0 : i32
    return %c0_i32, %c0_i32_0 : i32, i32
  }
  func.func @transform_5(%arg0: i32) -> (i32, i32, i32) {
    %c0_i32 = arith.constant 0 : i32
    %c0_i32_0 = arith.constant 0 : i32
    %c0_i32_1 = arith.constant 0 : i32
    return %arg0, %c0_i32, %c0_i32_0 : i32, i32, i32
  }
  func.func @transform_6(%arg0: i32) -> (i32, i32) {
    %c0_i32 = arith.constant 0 : i32
    %c0_i32_0 = arith.constant 0 : i32
    return %arg0, %c0_i32 : i32, i32
  }
}

</mosaic_0001>

<llo_original>
// kernel: tpu_custom_call.1
$region0: #{tpu_custom_call.1}
  #allocation0 [shape = 'u32[]', space=smem, size = 0x4, offset = 0x4, fixed_abs, tag = 'smem constant byte address 0x4 - core index']
  #allocation1 [shape = 'u32[144,128]{1,0:T(1,128)}', space=vmem, size = 0x12000, scoped, tag = 'internal scratch']
  %s0 = inlined_call_operand.vmem [shape: s32[8,1], index: 0, kind: input, shape index: {}]
  %s1 = inlined_call_operand.vmem [shape: f32[50,32], index: 1, kind: input, shape index: {}]
  %s2 = inlined_call_operand.vmem [shape: f32[32,16], index: 2, kind: input, shape index: {}]
  %s3 = inlined_call_operand.vmem [shape: f32[1,16], index: 3, kind: input, shape index: {}]
  %s4 = inlined_call_operand.vmem [shape: f32[16,32], index: 4, kind: input, shape index: {}]
  %s5 = inlined_call_operand.vmem [shape: f32[8,8,32], index: 5, kind: input, shape index: {}]
  %s6 = inlined_call_operand.hbm [shape: f32[8,32], index: 6, kind: output, shape index: {}]
  %s7 = sld [smem:[#allocation0]]
  $region34: #{tpu_custom_call.1} parent=0
    _
  %s9 = ssub.s32 1, %s7
  %s10 = scalar_select 0, %s9, %s7
  $region1: #{tpu_custom_call.1} parent=0
    #allocation2 [shape = 'u8[4096]{0}', space=vmem, size = 0x1000, scoped, tag = 'output window, operand 0, single buffered']
    #allocation3 [shape = 's32[1]{0}', space=sflag, size = 0x4, scoped, tag = 'scoped memory for tpu_custom_call.1']
    %11 = vsyncpa [#allocation3], 0
    // Predicated region
    $region2: #{tpu_custom_call.1} parent=1 // pred_check
      _
    $region3: #{tpu_custom_call.1} parent=1 // pred_check_branch
      %13 = sbr.rel (0) target = $region5
    $region4: #{tpu_custom_call.1} parent=1 // pred_region
      _
    $region5: #{tpu_custom_call.1} parent=1 // pred_fallthru
      _
    // Predicated region
    $region6: #{tpu_custom_call.1} parent=1 // pred_check
      _
    $region7: #{tpu_custom_call.1} parent=1 // pred_check_branch
      %15 = sbr.rel (0) target = $region9
    $region8: #{tpu_custom_call.1} parent=1 // pred_region
      _
    $region9: #{tpu_custom_call.1} parent=1 // pred_fallthru
      _
    // Predicated region
    $region10: #{tpu_custom_call.1} parent=1 // pred_check
      _
    $region11: #{tpu_custom_call.1} parent=1 // pred_check_branch
      %17 = sbr.rel (0) target = $region13
    $region12: #{tpu_custom_call.1} parent=1 // pred_region
      _
    $region13: #{tpu_custom_call.1} parent=1 // pred_fallthru
      _
    // Predicated region
    $region14: #{tpu_custom_call.1} parent=1 // pred_check
      _
    $region15: #{tpu_custom_call.1} parent=1 // pred_check_branch
      %19 = sbr.rel (0) target = $region17
    $region16: #{tpu_custom_call.1} parent=1 // pred_region
      _
    $region17: #{tpu_custom_call.1} parent=1 // pred_fallthru
      _
    // Predicated region
    $region18: #{tpu_custom_call.1} parent=1 // pred_check
      _
    $region19: #{tpu_custom_call.1} parent=1 // pred_check_branch
      %21 = sbr.rel (0) target = $region21
    $region20: #{tpu_custom_call.1} parent=1 // pred_region
      _
    $region21: #{tpu_custom_call.1} parent=1 // pred_fallthru
      _
    // Predicated region
    $region22: #{tpu_custom_call.1} parent=1 // pred_check
      _
    $region23: #{tpu_custom_call.1} parent=1 // pred_check_branch
      %23 = sbr.rel (0) target = $region25
    $region24: #{tpu_custom_call.1} parent=1 // pred_region
      _
    $region25: #{tpu_custom_call.1} parent=1 // pred_fallthru
      _
    %v24 = vld [vmem:[%s0] sm:$0xff]
    %v25 = vlaneseq
    %v26 = vand.u32 %v25, 127
    %27 = vset.pattern.permute.xlu0 0
    %28 = vperm.xlu0 %27, %v24
    %v29 = vpop.permute.xlu0 %28
    %vm30 = vcmp.eq.s32.totalorder %v29, %v26
    %v31 = vsel %vm30, 1, 0
    %v32 = vcvt.s32.f32 %v31
    %v33 = vld [vmem:[%s1] sm:$0xff]
    %v34 = vld [vmem:[%s1 + $0x8] sm:$0xff]
    %v35 = vld [vmem:[%s1 + $0x10] sm:$0xff]
    %v36 = vld [vmem:[%s1 + $0x18] sm:$0xff]
    %v37 = vld [vmem:[%s1 + $0x20] sm:$0xff]
    %v38 = vld [vmem:[%s1 + $0x28] sm:$0xff]
    %v39 = vld [vmem:[%s1 + $0x30] sm:$0x3]
    %vm40 = vcmask 408576
    %v42 = vsel %vm40, %v32, 0
    %vm44 = vcmask 1041408
    %v46 = vsel %vm44, %v39, 0
    %48 = vmatprep.subr.mxu0 0.0
    %49 = vmatpush1.msra.mxu0 %v33
    %50 = vmatprep.subr.mxu0 0.0
    %51 = vmatpush1.msra.mxu0 %v34
    %52 = vmatprep.subr.mxu0 0.0
    %53 = vmatpush1.msra.mxu0 %v35
    %54 = vmatprep.subr.mxu0 0.0
    %55 = vmatpush1.msra.mxu0 %v36
    %56 = vmatprep.subr.mxu0 0.0
    %57 = vmatpush1.msra.mxu0 %v37
    %58 = vmatprep.subr.mxu0 0.0
    %59 = vmatpush1.msra.mxu0 %v38
    %60 = vmatprep.subr.mxu0 0.0
    %61 = vmatpush1.msra.mxu0 %v46
    %62 = vmatprep.subr.mxu0 0.0
    %63 = vmatpush1.msra.mxu0 0.0
    %64 = vmatprep.subr.mxu0 0.0
    %65 = vmatpush1.msra.mxu0 0.0
    %66 = vmatprep.subr.mxu0 0.0
    %67 = vmatpush1.msra.mxu0 0.0
    %68 = vmatprep.subr.mxu0 0.0
    %69 = vmatpush1.msra.mxu0 0.0
    %70 = vmatprep.subr.mxu0 0.0
    %71 = vmatpush1.msra.mxu0 0.0
    %72 = vmatprep.subr.mxu0 0.0
    %73 = vmatpush1.msra.mxu0 0.0
    %74 = vmatprep.subr.mxu0 0.0
    %75 = vmatpush1.msra.mxu0 0.0
    %76 = vmatprep.subr.mxu0 0.0
    %77 = vmatpush1.msra.mxu0 0.0
    %78 = vmatprep.subr.mxu0 0.0
    %79 = vmatpush1.msra.mxu0 0.0
    %80 = vmatprep.subr.mxu0 0.0
    %81 = vmatpush1.msra.mxu0 0.0
    %82 = vmatprep.subr.mxu0 0.0
    %83 = vmatpush1.msra.mxu0 0.0
    %84 = vmatprep.subr.mxu0 0.0
    %85 = vmatpush1.msra.mxu0 0.0
    %86 = vmatprep.subr.mxu0 0.0
    %87 = vmatpush1.msra.mxu0 0.0
    %88 = vmatprep.subr.mxu0 0.0
    %89 = vmatpush1.msra.mxu0 0.0
    %90 = vmatprep.subr.mxu0 0.0
    %91 = vmatpush1.msra.mxu0 0.0
    %92 = vmatprep.subr.mxu0 0.0
    %93 = vmatpush1.msra.mxu0 0.0
    %94 = vmatprep.subr.mxu0 0.0
    %95 = vmatpush1.msra.mxu0 0.0
    %96 = vmatprep.subr.mxu0 0.0
    %97 = vmatpush1.msra.mxu0 0.0
    %98 = vmatprep.subr.mxu0 0.0
    %99 = vmatpush1.msra.mxu0 0.0
    %100 = vmatprep.subr.mxu0 0.0
    %101 = vmatpush1.msra.mxu0 0.0
    %102 = vmatprep.subr.mxu0 0.0
    %103 = vmatpush1.msra.mxu0 0.0
    %104 = vmatprep.subr.mxu0 0.0
    %105 = vmatpush1.msra.mxu0 0.0
    %106 = vmatprep.subr.mxu0 0.0
    %107 = vmatpush1.msra.mxu0 0.0
    %108 = vmatprep.subr.mxu0 0.0
    %109 = vmatpush1.msra.mxu0 0.0
    %110 = vmatprep.subr.mxu0 0.0
    %111 = vmatpush1.msra.mxu0 0.0
    %112 = vmatprep.mubr.f32.mxu0 0.0
    %113 = vmatmul.mubr.f32.gmra.mrb[0].mxu0 %v42
    %v114 = vpop.f32.mrb[0].mxu0
    %v115 = vadd.f32 0.0, %v114
    %v116 = vpop.f32.mrb[0].mxu0
    %117 = vdwg.mxu0
    %v118 = vld [vmem:[%s2] sm:$0xff]
    %v119 = vld [vmem:[%s2 + $0x8] sm:$0xff]
    %v120 = vld [vmem:[%s2 + $0x10] sm:$0xff]
    %v121 = vld [vmem:[%s2 + $0x18] sm:$0xff]
    %v122 = vld [vmem:[%s3] sm:$0x1]
    %v124 = vlaneseq
    %v125 = vshrl.u32 %v124, 7
    %v126 = vsub.s32 0, %v125
    %v127 = vrot.slane %v122, %v126
    %vm129 = vcmask 261120
    %v131 = vsel %vm129, %v115, 0
    %133 = vmatprep.subr.mxu0 0.0
    %134 = vmatpush1.msra.mxu0 %v118
    %135 = vmatprep.subr.mxu0 0.0
    %136 = vmatpush1.msra.mxu0 %v119
    %137 = vmatprep.subr.mxu0 0.0
    %138 = vmatpush1.msra.mxu0 %v120
    %139 = vmatprep.subr.mxu0 0.0
    %140 = vmatpush1.msra.mxu0 %v121
    %141 = vmatprep.subr.mxu0 0.0
    %142 = vmatpush1.msra.mxu0 0.0
    %143 = vmatprep.subr.mxu0 0.0
    %144 = vmatpush1.msra.mxu0 0.0
    %145 = vmatprep.subr.mxu0 0.0
    %146 = vmatpush1.msra.mxu0 0.0
    %147 = vmatprep.subr.mxu0 0.0
    %148 = vmatpush1.msra.mxu0 0.0
    %149 = vmatprep.subr.mxu0 0.0
    %150 = vmatpush1.msra.mxu0 0.0
    %151 = vmatprep.subr.mxu0 0.0
    %152 = vmatpush1.msra.mxu0 0.0
    %153 = vmatprep.subr.mxu0 0.0
    %154 = vmatpush1.msra.mxu0 0.0
    %155 = vmatprep.subr.mxu0 0.0
    %156 = vmatpush1.msra.mxu0 0.0
    %157 = vmatprep.subr.mxu0 0.0
    %158 = vmatpush1.msra.mxu0 0.0
    %159 = vmatprep.subr.mxu0 0.0
    %160 = vmatpush1.msra.mxu0 0.0
    %161 = vmatprep.subr.mxu0 0.0
    %162 = vmatpush1.msra.mxu0 0.0
    %163 = vmatprep.subr.mxu0 0.0
    %164 = vmatpush1.msra.mxu0 0.0
    %165 = vmatprep.subr.mxu0 0.0
    %166 = vmatpush1.msra.mxu0 0.0
    %167 = vmatprep.subr.mxu0 0.0
    %168 = vmatpush1.msra.mxu0 0.0
    %169 = vmatprep.subr.mxu0 0.0
    %170 = vmatpush1.msra.mxu0 0.0
    %171 = vmatprep.subr.mxu0 0.0
    %172 = vmatpush1.msra.mxu0 0.0
    %173 = vmatprep.subr.mxu0 0.0
    %174 = vmatpush1.msra.mxu0 0.0
    %175 = vmatprep.subr.mxu0 0.0
    %176 = vmatpush1.msra.mxu0 0.0
    %177 = vmatprep.subr.mxu0 0.0
    %178 = vmatpush1.msra.mxu0 0.0
    %179 = vmatprep.subr.mxu0 0.0
    %180 = vmatpush1.msra.mxu0 0.0
    %181 = vmatprep.subr.mxu0 0.0
    %182 = vmatpush1.msra.mxu0 0.0
    %183 = vmatprep.subr.mxu0 0.0
    %184 = vmatpush1.msra.mxu0 0.0
    %185 = vmatprep.subr.mxu0 0.0
    %186 = vmatpush1.msra.mxu0 0.0
    %187 = vmatprep.subr.mxu0 0.0
    %188 = vmatpush1.msra.mxu0 0.0
    %189 = vmatprep.subr.mxu0 0.0
    %190 = vmatpush1.msra.mxu0 0.0
    %191 = vmatprep.subr.mxu0 0.0
    %192 = vmatpush1.msra.mxu0 0.0
    %193 = vmatprep.subr.mxu0 0.0
    %194 = vmatpush1.msra.mxu0 0.0
    %195 = vmatprep.subr.mxu0 0.0
    %196 = vmatpush1.msra.mxu0 0.0
    %197 = vmatprep.mubr.f32.mxu0 0.0
    %198 = vmatmul.mubr.f32.gmra.mrb[0].mxu0 %v131
    %v199 = vpop.f32.mrb[0].mxu0
    %v200 = vadd.f32 %v127, %v199
    %v201 = vpop.f32.mrb[0].mxu0
    %202 = vdwg.mxu0
    %v203 = vmax.f32 %v200, 0.0
    %v204 = vld [vmem:[%s4] sm:$0xff]
    %v205 = vld [vmem:[%s4 + $0x8] sm:$0xff]
    %vm206 = vcmask 130048
    %v208 = vsel %vm206, %v203, 0
    %210 = vmatprep.subr.mxu0 0.0
    %211 = vmatpush1.msra.mxu0 %v204
    %212 = vmatprep.subr.mxu0 0.0
    %213 = vmatpush1.msra.mxu0 %v205
    %214 = vmatprep.subr.mxu0 0.0
    %215 = vmatpush1.msra.mxu0 0.0
    %216 = vmatprep.subr.mxu0 0.0
    %217 = vmatpush1.msra.mxu0 0.0
    %218 = vmatprep.subr.mxu0 0.0
    %219 = vmatpush1.msra.mxu0 0.0
    %220 = vmatprep.subr.mxu0 0.0
    %221 = vmatpush1.msra.mxu0 0.0
    %222 = vmatprep.subr.mxu0 0.0
    %223 = vmatpush1.msra.mxu0 0.0
    %224 = vmatprep.subr.mxu0 0.0
    %225 = vmatpush1.msra.mxu0 0.0
    %226 = vmatprep.subr.mxu0 0.0
    %227 = vmatpush1.msra.mxu0 0.0
    %228 = vmatprep.subr.mxu0 0.0
    %229 = vmatpush1.msra.mxu0 0.0
    %230 = vmatprep.subr.mxu0 0.0
    %231 = vmatpush1.msra.mxu0 0.0
    %232 = vmatprep.subr.mxu0 0.0
    %233 = vmatpush1.msra.mxu0 0.0
    %234 = vmatprep.subr.mxu0 0.0
    %235 = vmatpush1.msra.mxu0 0.0
    %236 = vmatprep.subr.mxu0 0.0
    %237 = vmatpush1.msra.mxu0 0.0
    %238 = vmatprep.subr.mxu0 0.0
    %239 = vmatpush1.msra.mxu0 0.0
    %240 = vmatprep.subr.mxu0 0.0
    %241 = vmatpush1.msra.mxu0 0.0
    %242 = vmatprep.subr.mxu0 0.0
    %243 = vmatpush1.msra.mxu0 0.0
    %244 = vmatprep.subr.mxu0 0.0
    %245 = vmatpush1.msra.mxu0 0.0
    %246 = vmatprep.subr.mxu0 0.0
    %247 = vmatpush1.msra.mxu0 0.0
    %248 = vmatprep.subr.mxu0 0.0
    %249 = vmatpush1.msra.mxu0 0.0
    %250 = vmatprep.subr.mxu0 0.0
    %251 = vmatpush1.msra.mxu0 0.0
    %252 = vmatprep.subr.mxu0 0.0
    %253 = vmatpush1.msra.mxu0 0.0
    %254 = vmatprep.subr.mxu0 0.0
    %255 = vmatpush1.msra.mxu0 0.0
    %256 = vmatprep.subr.mxu0 0.0
    %257 = vmatpush1.msra.mxu0 0.0
    %258 = vmatprep.subr.mxu0 0.0
    %259 = vmatpush1.msra.mxu0 0.0
    %260 = vmatprep.subr.mxu0 0.0
    %261 = vmatpush1.msra.mxu0 0.0
    %262 = vmatprep.subr.mxu0 0.0
    %263 = vmatpush1.msra.mxu0 0.0
    %264 = vmatprep.subr.mxu0 0.0
    %265 = vmatpush1.msra.mxu0 0.0
    %266 = vmatprep.subr.mxu0 0.0
    %267 = vmatpush1.msra.mxu0 0.0
    %268 = vmatprep.subr.mxu0 0.0
    %269 = vmatpush1.msra.mxu0 0.0
    %270 = vmatprep.subr.mxu0 0.0
    %271 = vmatpush1.msra.mxu0 0.0
    %272 = vmatprep.subr.mxu0 0.0
    %273 = vmatpush1.msra.mxu0 0.0
    %274 = vmatprep.mubr.f32.mxu0 0.0
    %275 = vmatmul.mubr.f32.gmra.mrb[0].mxu0 %v208
    %v276 = vpop.f32.mrb[0].mxu0
    %v277 = vadd.f32 0.0, %v276
    %v278 = vpop.f32.mrb[0].mxu0
    %279 = vdwg.mxu0
    %v280 = vld [vmem:[%s5] sm:$0xff]
    %v281 = vld [vmem:[%s5 + $0x8] sm:$0xff]
    %v282 = vld [vmem:[%s5 + $0x10] sm:$0xff]
    %v283 = vld [vmem:[%s5 + $0x18] sm:$0xff]
    %v284 = vld [vmem:[%s5 + $0x20] sm:$0xff]
    %v285 = vld [vmem:[%s5 + $0x28] sm:$0xff]
    %v286 = vld [vmem:[%s5 + $0x30] sm:$0xff]
    %v287 = vld [vmem:[%s5 + $0x38] sm:$0xff]
    %v289 = vcombine.high %v277, %v277
    %v291 = vunpack.c.l.s4 1966171168
    %v292 = vunpack.c.0.s8 %v291
    %v293 = vlaneseq
    %v294 = vshrl.u32 %v293, 7
    %v295 = vsub.s32 %v292, %v294
    %v296 = vrot.slane %v277, %v295
    %v298 = vunpack.c.l.s4 1966171168
    %v299 = vunpack.c.0.s8 %v298
    %v300 = vlaneseq
    %v301 = vshrl.u32 %v300, 7
    %v302 = vsub.s32 %v299, %v301
    %v303 = vrot.slane %v289, %v302
    %v304 = vcombine.high %v296, %v296
    %v305 = vcombine.high %v303, %v303
    %v307 = vunpack.c.l.s4 1966171168
    %v308 = vunpack.c.0.s8 %v307
    %v309 = vlaneseq
    %v310 = vshrl.u32 %v309, 7
    %v311 = vsub.s32 %v308, %v310
    %v312 = vrot.slane %v296, %v311
    %v314 = vunpack.c.l.s4 1966171168
    %v315 = vunpack.c.0.s8 %v314
    %v316 = vlaneseq
    %v317 = vshrl.u32 %v316, 7
    %v318 = vsub.s32 %v315, %v317
    %v319 = vrot.slane %v303, %v318
    %v321 = vunpack.c.l.s4 1966171168
    %v322 = vunpack.c.0.s8 %v321
    %v323 = vlaneseq
    %v324 = vshrl.u32 %v323, 7
    %v325 = vsub.s32 %v322, %v324
    %v326 = vrot.slane %v304, %v325
    %v328 = vunpack.c.l.s4 1966171168
    %v329 = vunpack.c.0.s8 %v328
    %v330 = vlaneseq
    %v331 = vshrl.u32 %v330, 7
    %v332 = vsub.s32 %v329, %v331
    %v333 = vrot.slane %v305, %v332
    %v334 = vcombine.high %v312, %v312
    %v335 = vcombine.high %v319, %v319
    %v336 = vcombine.high %v326, %v326
    %v337 = vcombine.high %v333, %v333
    %v338 = vlaneseq
    %v339 = vshrl.u32 %v338, 7
    %v340 = vsub.s32 0, %v339
    %v341 = vrot.slane %v312, %v340
    %v342 = vlaneseq
    %v343 = vshrl.u32 %v342, 7
    %v344 = vsub.s32 0, %v343
    %v345 = vrot.slane %v326, %v344
    %v346 = vlaneseq
    %v347 = vshrl.u32 %v346, 7
    %v348 = vsub.s32 0, %v347
    %v349 = vrot.slane %v334, %v348
    %v350 = vlaneseq
    %v351 = vshrl.u32 %v350, 7
    %v352 = vsub.s32 0, %v351
    %v353 = vrot.slane %v336, %v352
    %v354 = vlaneseq
    %v355 = vshrl.u32 %v354, 7
    %v356 = vsub.s32 0, %v355
    %v357 = vrot.slane %v319, %v356
    %v358 = vlaneseq
    %v359 = vshrl.u32 %v358, 7
    %v360 = vsub.s32 0, %v359
    %v361 = vrot.slane %v333, %v360
    %v362 = vlaneseq
    %v363 = vshrl.u32 %v362, 7
    %v364 = vsub.s32 0, %v363
    %v365 = vrot.slane %v335, %v364
    %v366 = vlaneseq
    %v367 = vshrl.u32 %v366, 7
    %v368 = vsub.s32 0, %v367
    %v369 = vrot.slane %v337, %v368
    %v378 = vmul.f32 %v341, %v280
    %v379 = vmul.f32 %v345, %v281
    %v380 = vmul.f32 %v349, %v282
    %v381 = vmul.f32 %v353, %v283
    %v382 = vmul.f32 %v357, %v284
    %v383 = vmul.f32 %v361, %v285
    %v384 = vmul.f32 %v365, %v286
    %v385 = vmul.f32 %v369, %v287
    %v386 = vsel %vm129, %v378, 0.0
    %387 = vadd.xlane.f32.xlu0 %v386
    %v388 = vpop.xlane.xlu0 %387
    %v389 = vsel %vm129, %v379, 0.0
    %390 = vadd.xlane.f32.xlu0 %v389
    %v391 = vpop.xlane.xlu0 %390
    %v392 = vsel %vm129, %v380, 0.0
    %393 = vadd.xlane.f32.xlu0 %v392
    %v394 = vpop.xlane.xlu0 %393
    %v395 = vsel %vm129, %v381, 0.0
    %396 = vadd.xlane.f32.xlu0 %v395
    %v397 = vpop.xlane.xlu0 %396
    %v398 = vsel %vm129, %v382, 0.0
    %399 = vadd.xlane.f32.xlu0 %v398
    %v400 = vpop.xlane.xlu0 %399
    %v401 = vsel %vm129, %v383, 0.0
    %402 = vadd.xlane.f32.xlu0 %v401
    %v403 = vpop.xlane.xlu0 %402
    %v404 = vsel %vm129, %v384, 0.0
    %405 = vadd.xlane.f32.xlu0 %v404
    %v406 = vpop.xlane.xlu0 %405
    %v407 = vsel %vm129, %v385, 0.0
    %408 = vadd.xlane.f32.xlu0 %v407
    %v409 = vpop.xlane.xlu0 %408
    %v418 = vlaneseq
    %v419 = vshrl.u32 %v418, 7
    %v420 = vsub.s32 %v26, %v419
    %v421 = vrot.slane %v388, %v420
    %v422 = vlaneseq
    %v423 = vshrl.u32 %v422, 7
    %v424 = vsub.s32 %v26, %v423
    %v425 = vrot.slane %v391, %v424
    %v426 = vlaneseq
    %v427 = vshrl.u32 %v426, 7
    %v428 = vsub.s32 %v26, %v427
    %v429 = vrot.slane %v394, %v428
    %v430 = vlaneseq
    %v431 = vshrl.u32 %v430, 7
    %v432 = vsub.s32 %v26, %v431
    %v433 = vrot.slane %v397, %v432
    %v434 = vlaneseq
    %v435 = vshrl.u32 %v434, 7
    %v436 = vsub.s32 %v26, %v435
    %v437 = vrot.slane %v400, %v436
    %v438 = vlaneseq
    %v439 = vshrl.u32 %v438, 7
    %v440 = vsub.s32 %v26, %v439
    %v441 = vrot.slane %v403, %v440
    %v442 = vlaneseq
    %v443 = vshrl.u32 %v442, 7
    %v444 = vsub.s32 %v26, %v443
    %v445 = vrot.slane %v406, %v444
    %v446 = vlaneseq
    %v447 = vshrl.u32 %v446, 7
    %v448 = vsub.s32 %v26, %v447
    %v449 = vrot.slane %v409, %v448
    %vm450 = vcmask 1041409
    %v451 = vsel %vm450, %v425, %v421
    %vm452 = vcmask 1042434
    %v453 = vsel %vm452, %v429, %v451
    %vm454 = vcmask 1043459
    %v455 = vsel %vm454, %v433, %v453
    %vm456 = vcmask 1044484
    %v457 = vsel %vm456, %v437, %v455
    %vm458 = vcmask 1045509
    %v459 = vsel %vm458, %v441, %v457
    %vm460 = vcmask 1046534
    %v461 = vsel %vm460, %v445, %v459
    %vm462 = vcmask 1047559
    %v463 = vsel %vm462, %v449, %v461
    %vm465 = vcmask 64512
    %v466 = vsel %vm465, %v463, -inf
    %467 = vmax.xlane.f32.xlu0 %v466
    %v468 = vpop.xlane.xlu0 %467
    %v470 = vlaneseq
    %v471 = vshrl.u32 %v470, 7
    %v472 = vsub.s32 0, %v471
    %v473 = vrot.slane %v468, %v472
    %v474 = vlaneseq
    %v475 = vshrl.u32 %v474, 7
    %v476 = vsub.s32 1, %v475
    %v477 = vrot.slane %v468, %v476
    %v478 = vlaneseq
    %v479 = vshrl.u32 %v478, 7
    %v480 = vsub.s32 2, %v479
    %v481 = vrot.slane %v468, %v480
    %v482 = vlaneseq
    %v483 = vshrl.u32 %v482, 7
    %v484 = vsub.s32 3, %v483
    %v485 = vrot.slane %v468, %v484
    %v486 = vlaneseq
    %v487 = vshrl.u32 %v486, 7
    %v488 = vsub.s32 4, %v487
    %v489 = vrot.slane %v468, %v488
    %v490 = vlaneseq
    %v491 = vshrl.u32 %v490, 7
    %v492 = vsub.s32 5, %v491
    %v493 = vrot.slane %v468, %v492
    %v494 = vlaneseq
    %v495 = vshrl.u32 %v494, 7
    %v496 = vsub.s32 6, %v495
    %v497 = vrot.slane %v468, %v496
    %v498 = vlaneseq
    %v499 = vshrl.u32 %v498, 7
    %v500 = vsub.s32 7, %v499
    %v501 = vrot.slane %v468, %v500
    %v510 = vsub.f32 %v388, %v473
    %v511 = vsub.f32 %v391, %v477
    %v512 = vsub.f32 %v394, %v481
    %v513 = vsub.f32 %v397, %v485
    %v514 = vsub.f32 %v400, %v489
    %v515 = vsub.f32 %v403, %v493
    %v516 = vsub.f32 %v406, %v497
    %v517 = vsub.f32 %v409, %v501
    %v518 = vmul.f32 %v510, 1.442695
    %v519 = vpow.pop %v518
    %v520 = vmul.f32 %v511, 1.442695
    %v521 = vpow.pop %v520
    %v522 = vmul.f32 %v512, 1.442695
    %v523 = vpow.pop %v522
    %v524 = vmul.f32 %v513, 1.442695
    %v525 = vpow.pop %v524
    %v526 = vmul.f32 %v514, 1.442695
    %v527 = vpow.pop %v526
    %v528 = vmul.f32 %v515, 1.442695
    %v529 = vpow.pop %v528
    %v530 = vmul.f32 %v516, 1.442695
    %v531 = vpow.pop %v530
    %v532 = vmul.f32 %v517, 1.442695
    %v533 = vpow.pop %v532
    %542 = vset.pattern.permute.xlu0 0
    %543 = vperm.xlu0 %542, %v519
    %v544 = vpop.permute.xlu0 %543
    %545 = vset.pattern.permute.xlu0 0
    %546 = vperm.xlu0 %545, %v521
    %v547 = vpop.permute.xlu0 %546
    %548 = vset.pattern.permute.xlu0 0
    %549 = vperm.xlu0 %548, %v523
    %v550 = vpop.permute.xlu0 %549
    %551 = vset.pattern.permute.xlu0 0
    %552 = vperm.xlu0 %551, %v525
    %v553 = vpop.permute.xlu0 %552
    %554 = vset.pattern.permute.xlu0 0
    %555 = vperm.xlu0 %554, %v527
    %v556 = vpop.permute.xlu0 %555
    %557 = vset.pattern.permute.xlu0 0
    %558 = vperm.xlu0 %557, %v529
    %v559 = vpop.permute.xlu0 %558
    %560 = vset.pattern.permute.xlu0 0
    %561 = vperm.xlu0 %560, %v531
    %v562 = vpop.permute.xlu0 %561
    %563 = vset.pattern.permute.xlu0 0
    %564 = vperm.xlu0 %563, %v533
    %v565 = vpop.permute.xlu0 %564
    %v566 = vlaneseq
    %v567 = vshrl.u32 %v566, 7
    %v568 = vsub.s32 %v26, %v567
    %v569 = vrot.slane %v544, %v568
    %v570 = vlaneseq
    %v571 = vshrl.u32 %v570, 7
    %v572 = vsub.s32 %v26, %v571
    %v573 = vrot.slane %v547, %v572
    %v574 = vlaneseq
    %v575 = vshrl.u32 %v574, 7
    %v576 = vsub.s32 %v26, %v575
    %v577 = vrot.slane %v550, %v576
    %v578 = vlaneseq
    %v579 = vshrl.u32 %v578, 7
    %v580 = vsub.s32 %v26, %v579
    %v581 = vrot.slane %v553, %v580
    %v582 = vlaneseq
    %v583 = vshrl.u32 %v582, 7
    %v584 = vsub.s32 %v26, %v583
    %v585 = vrot.slane %v556, %v584
    %v586 = vlaneseq
    %v587 = vshrl.u32 %v586, 7
    %v588 = vsub.s32 %v26, %v587
    %v589 = vrot.slane %v559, %v588
    %v590 = vlaneseq
    %v591 = vshrl.u32 %v590, 7
    %v592 = vsub.s32 %v26, %v591
    %v593 = vrot.slane %v562, %v592
    %v594 = vlaneseq
    %v595 = vshrl.u32 %v594, 7
    %v596 = vsub.s32 %v26, %v595
    %v597 = vrot.slane %v565, %v596
    %v598 = vsel %vm450, %v573, %v569
    %v599 = vsel %vm452, %v577, %v598
    %v600 = vsel %vm454, %v581, %v599
    %v601 = vsel %vm456, %v585, %v600
    %v602 = vsel %vm458, %v589, %v601
    %v603 = vsel %vm460, %v593, %v602
    %v604 = vsel %vm462, %v597, %v603
    %v606 = vsel %vm465, %v604, 0.0
    %607 = vadd.xlane.f32.xlu0 %v606
    %v608 = vpop.xlane.xlu0 %607
    %v609 = vrcp.pop %v608
    %v611 = vlaneseq
    %v612 = vshrl.u32 %v611, 7
    %v613 = vsub.s32 0, %v612
    %v614 = vrot.slane %v609, %v613
    %v615 = vlaneseq
    %v616 = vshrl.u32 %v615, 7
    %v617 = vsub.s32 1, %v616
    %v618 = vrot.slane %v609, %v617
    %v619 = vlaneseq
    %v620 = vshrl.u32 %v619, 7
    %v621 = vsub.s32 2, %v620
    %v622 = vrot.slane %v609, %v621
    %v623 = vlaneseq
    %v624 = vshrl.u32 %v623, 7
    %v625 = vsub.s32 3, %v624
    %v626 = vrot.slane %v609, %v625
    %v627 = vlaneseq
    %v628 = vshrl.u32 %v627, 7
    %v629 = vsub.s32 4, %v628
    %v630 = vrot.slane %v609, %v629
    %v631 = vlaneseq
    %v632 = vshrl.u32 %v631, 7
    %v633 = vsub.s32 5, %v632
    %v634 = vrot.slane %v609, %v633
    %v635 = vlaneseq
    %v636 = vshrl.u32 %v635, 7
    %v637 = vsub.s32 6, %v636
    %v638 = vrot.slane %v609, %v637
    %v639 = vlaneseq
    %v640 = vshrl.u32 %v639, 7
    %v641 = vsub.s32 7, %v640
    %v642 = vrot.slane %v609, %v641
    %v651 = vmul.f32 %v519, %v614
    %v652 = vmul.f32 %v521, %v618
    %v653 = vmul.f32 %v523, %v622
    %v654 = vmul.f32 %v525, %v626
    %v655 = vmul.f32 %v527, %v630
    %v656 = vmul.f32 %v529, %v634
    %v657 = vmul.f32 %v531, %v638
    %v658 = vmul.f32 %v533, %v642
    %660 = vset.pattern.permute.xlu0 0
    %661 = vperm.xlu0 %660, %v651
    %v662 = vpop.permute.xlu0 %661
    %665 = vset.pattern.permute.xlu0 0
    %666 = vperm.xlu0 %665, %v652
    %v667 = vpop.permute.xlu0 %666
    %670 = vset.pattern.permute.xlu0 0
    %671 = vperm.xlu0 %670, %v653
    %v672 = vpop.permute.xlu0 %671
    %675 = vset.pattern.permute.xlu0 0
    %676 = vperm.xlu0 %675, %v654
    %v677 = vpop.permute.xlu0 %676
    %680 = vset.pattern.permute.xlu0 0
    %681 = vperm.xlu0 %680, %v655
    %v682 = vpop.permute.xlu0 %681
    %685 = vset.pattern.permute.xlu0 0
    %686 = vperm.xlu0 %685, %v656
    %v687 = vpop.permute.xlu0 %686
    %690 = vset.pattern.permute.xlu0 0
    %691 = vperm.xlu0 %690, %v657
    %v692 = vpop.permute.xlu0 %691
    %695 = vset.pattern.permute.xlu0 0
    %696 = vperm.xlu0 %695, %v658
    %v697 = vpop.permute.xlu0 %696
    %v699 = vmul.f32 %v280, %v662
    %v700 = vmul.f32 %v281, %v667
    %v701 = vmul.f32 %v282, %v672
    %v702 = vmul.f32 %v283, %v677
    %v703 = vmul.f32 %v284, %v682
    %v704 = vmul.f32 %v285, %v687
    %v705 = vmul.f32 %v286, %v692
    %v706 = vmul.f32 %v287, %v697
    %v707 = vsel %vm129, %v699, 0.0
    %v708 = vrot.slane %v707, 4
    %v709 = vadd.f32 %v707, %v708
    %v710 = vrot.slane %v709, 2
    %v711 = vadd.f32 %v709, %v710
    %v712 = vrot.slane %v711, 1
    %v713 = vadd.f32 %v711, %v712
    %v714 = vsel %vm129, %v700, 0.0
    %v715 = vrot.slane %v714, 4
    %v716 = vadd.f32 %v714, %v715
    %v717 = vrot.slane %v716, 2
    %v718 = vadd.f32 %v716, %v717
    %v719 = vrot.slane %v718, 1
    %v720 = vadd.f32 %v718, %v719
    %v721 = vsel %vm129, %v701, 0.0
    %v722 = vrot.slane %v721, 4
    %v723 = vadd.f32 %v721, %v722
    %v724 = vrot.slane %v723, 2
    %v725 = vadd.f32 %v723, %v724
    %v726 = vrot.slane %v725, 1
    %v727 = vadd.f32 %v725, %v726
    %v728 = vsel %vm129, %v702, 0.0
    %v729 = vrot.slane %v728, 4
    %v730 = vadd.f32 %v728, %v729
    %v731 = vrot.slane %v730, 2
    %v732 = vadd.f32 %v730, %v731
    %v733 = vrot.slane %v732, 1
    %v734 = vadd.f32 %v732, %v733
    %v735 = vsel %vm129, %v703, 0.0
    %v736 = vrot.slane %v735, 4
    %v737 = vadd.f32 %v735, %v736
    %v738 = vrot.slane %v737, 2
    %v739 = vadd.f32 %v737, %v738
    %v740 = vrot.slane %v739, 1
    %v741 = vadd.f32 %v739, %v740
    %v742 = vsel %vm129, %v704, 0.0
    %v743 = vrot.slane %v742, 4
    %v744 = vadd.f32 %v742, %v743
    %v745 = vrot.slane %v744, 2
    %v746 = vadd.f32 %v744, %v745
    %v747 = vrot.slane %v746, 1
    %v748 = vadd.f32 %v746, %v747
    %v749 = vsel %vm129, %v705, 0.0
    %v750 = vrot.slane %v749, 4
    %v751 = vadd.f32 %v749, %v750
    %v752 = vrot.slane %v751, 2
    %v753 = vadd.f32 %v751, %v752
    %v754 = vrot.slane %v753, 1
    %v755 = vadd.f32 %v753, %v754
    %v756 = vsel %vm129, %v706, 0.0
    %v757 = vrot.slane %v756, 4
    %v758 = vadd.f32 %v756, %v757
    %v759 = vrot.slane %v758, 2
    %v760 = vadd.f32 %v758, %v759
    %v761 = vrot.slane %v760, 1
    %v762 = vadd.f32 %v760, %v761
    %v771 = vsel %vm450, %v720, %v713
    %v772 = vsel %vm452, %v727, %v771
    %v773 = vsel %vm454, %v734, %v772
    %v774 = vsel %vm456, %v741, %v773
    %v775 = vsel %vm458, %v748, %v774
    %v776 = vsel %vm460, %v755, %v775
    %v777 = vsel %vm462, %v762, %v776
    %779 = vst.msk [vmem:[#allocation2] sm:$0xff] %vm129, %v777
    // Predicated region
    $region26: #{tpu_custom_call.1} parent=1 // pred_check
      _
    $region27: #{tpu_custom_call.1} parent=1 // pred_check_branch
      %781 = sbr.rel (0) target = $region29
    $region28: #{tpu_custom_call.1} parent=1 // pred_region
      %s783 = ssub.s32 128, 128
      %784 = vsyncadd [#allocation3], %s783
      %s786 = sshll.u32 [#allocation2], 4
      %s787 = int_to_ptr.vmem [resolvable:$true] %s786
      %789 = dma.vmem_to_hbm [thread:$0]  %s787, 128, %s6, [#allocation3]
    $region29: #{tpu_custom_call.1} parent=1 // pred_fallthru
      _
    // Predicated region
    $region30: #{tpu_custom_call.1} parent=1 // pred_check
      _
    $region31: #{tpu_custom_call.1} parent=1 // pred_check_branch
      %791 = sbr.rel (0) target = $region33
    $region32: #{tpu_custom_call.1} parent=1 // pred_region
      %792 = dma.done [#allocation3], 128
    $region33: #{tpu_custom_call.1} parent=1 // pred_fallthru
      _
    %793 = vsyncpa [#allocation3], 1

</llo_original>
